<compile_context>
chip_gen: v6e
topology: v6e:2x2x1
jax: 0.10.0
libtpu: 0.0.40
codegen_flags: <defaults>
</compile_context>

<pallas_src>
import jax
import jax.numpy as jnp
from jax.experimental import pallas as pl
from jax.experimental.pallas import tpu as pltpu

_LANES = 1024          # lane-dense width: 8x the 128-lane vreg width
_MAX_BLOCK_ROWS = 256  # 256 x 1024 x 4 B = 1 MiB per f32 block


def _linreg_kernel(w_ref, b_ref, x_ref, o_ref):
    # w_ref, b_ref: (1, 1) scalars in SMEM; x_ref, o_ref: (block_rows, LANES) in VMEM.
    w = w_ref[0, 0]
    b = b_ref[0, 0]
    o_ref[...] = w * x_ref[...] + b


def _padded_layout(n):
    """Pick a (total_rows, block_rows) pair for a length-n vector.

    total_rows * _LANES >= n, total_rows is a multiple of block_rows, and
    block_rows is a multiple of 8 (sublane) with _LANES a multiple of 128
    (lane), so every block is (8,128)-aligned and stores are unmasked.
    """
    rows_needed = -(-n // _LANES)                    # ceil(n / LANES)
    if rows_needed <= _MAX_BLOCK_ROWS:
        block_rows = max(8, -(-rows_needed // 8) * 8)  # round up to multiple of 8
    else:
        block_rows = _MAX_BLOCK_ROWS
    total_rows = -(-rows_needed // block_rows) * block_rows
    return total_rows, block_rows


def linear_regression(x, w, b):
    """y = w * x + b, matching the PyTorch module semantics.

    x: float32 array of shape (N,)
    w, b: float32 arrays of shape (1,) (nn.Parameter(torch.randn(1)))
    """
    n = x.shape[0]
    rows, block_rows = _padded_layout(n)
    n_pad = rows * _LANES

    # Pad to a full (rows, LANES) slab; padded lanes are sliced off at the end.
    x_pad = x if n_pad == n else jnp.pad(x, (0, n_pad - n))
    x2 = x_pad.reshape(rows, _LANES)
    w2 = w.reshape(1, 1).astype(x.dtype)
    b2 = b.reshape(1, 1).astype(x.dtype)

    grid = (rows // block_rows,)

    out = pl.pallas_call(
        _linreg_kernel,
        out_shape=jax.ShapeDtypeStruct((rows, _LANES), x.dtype),
        grid_spec=pltpu.PrefetchScalarGridSpec(
            num_scalar_prefetch=0,
            grid=grid,
            in_specs=[
                pl.BlockSpec((1, 1), lambda i: (0, 0),
                             memory_space=pltpu.SMEM),
                pl.BlockSpec((1, 1), lambda i: (0, 0),
                             memory_space=pltpu.SMEM),
                pl.BlockSpec((block_rows, _LANES), lambda i: (i, 0)),
            ],
            out_specs=pl.BlockSpec((block_rows, _LANES), lambda i: (i, 0)),
        ),
        compiler_params=pltpu.CompilerParams(
            dimension_semantics=("parallel",),
        ),
    )(w2, b2, x2)
    return out.reshape(n_pad)[:n]


if __name__ == "__main__":
    key = jax.random.PRNGKey(0)
    kw, kb, kx = jax.random.split(key, 3)

    # Deterministic parameter init (stand-in for torch.randn(1)).
    w = jax.random.normal(kw, (1,), dtype=jnp.float32)
    b = jax.random.normal(kb, (1,), dtype=jnp.float32)

    # Same example input as the reference script: torch.FloatTensor([0.5, 5, 8.75])
    x_small = jnp.array([0.5, 5.0, 8.75], dtype=jnp.float32)
    y_small = linear_regression(x_small, w, b)
    jax.block_until_ready(y_small)
    assert jnp.allclose(y_small, w[0] * x_small + b[0], atol=1e-6), (
        y_small, w[0] * x_small + b[0])

    # Larger, ragged input to exercise the tiled / pipelined / padded path
    # (multiple grid steps + tail padding).
    n_big = 3 * _MAX_BLOCK_ROWS * _LANES + 57
    x_big = jax.random.normal(kx, (n_big,), dtype=jnp.float32)
    y_big = linear_regression(x_big, w, b)
    jax.block_until_ready(y_big)
    assert jnp.allclose(y_big, w[0] * x_big + b[0], atol=1e-5)

    print("KERNEL_OK")
</pallas_src>

<mosaic_0001>
module attributes {stable_mosaic.version = 11 : i64} {
  func.func @_linreg_kernel(%arg0: i32, %arg1: memref<1x1xf32, #tpu.memory_space<smem>>, %arg2: memref<1x1xf32, #tpu.memory_space<smem>>, %arg3: memref<8x1024xf32, #tpu.memory_space<vmem>>, %arg4: memref<8x1024xf32, #tpu.memory_space<vmem>>) attributes {dimension_semantics = [#tpu.dimension_semantics<parallel>], iteration_bounds = array<i64: 1>, scalar_prefetch = 0 : i64, scratch_operands = 0 : i64, tpu.core_type = #tpu.core_type<tc>, window_params = [{transform_indices = @transform_0, window_bounds = array<i64: 1, 1>}, {transform_indices = @transform_1, window_bounds = array<i64: 1, 1>}, {transform_indices = @transform_2, window_bounds = array<i64: 8, 1024>}, {transform_indices = @transform_3, window_bounds = array<i64: 8, 1024>}]} {
    %c0 = arith.constant 0 : index
    %c0_0 = arith.constant 0 : index
    %0 = memref.load %arg1[%c0, %c0_0] : memref<1x1xf32, #tpu.memory_space<smem>>
    %c0_1 = arith.constant 0 : index
    %c0_2 = arith.constant 0 : index
    %1 = memref.load %arg2[%c0_1, %c0_2] : memref<1x1xf32, #tpu.memory_space<smem>>
    %c0_3 = arith.constant 0 : index
    %c0_4 = arith.constant 0 : index
    %2 = vector.load %arg3[%c0_3, %c0_4] : memref<8x1024xf32, #tpu.memory_space<vmem>>, vector<8x1024xf32>
    %3 = vector.broadcast %0 : f32 to vector<8x1024xf32>
    %4 = arith.mulf %3, %2 : vector<8x1024xf32>
    %5 = vector.broadcast %1 : f32 to vector<8x1024xf32>
    %6 = arith.addf %4, %5 : vector<8x1024xf32>
    %c0_5 = arith.constant 0 : index
    %c0_6 = arith.constant 0 : index
    %7 = vector.load %arg4[%c0_5, %c0_6] : memref<8x1024xf32, #tpu.memory_space<vmem>>, vector<8x1024xf32>
    tpu.vector_store %arg4[%c0_5, %c0_6], %6 {strides = array<i32>} : memref<8x1024xf32, #tpu.memory_space<vmem>>, vector<8x1024xf32>,
    return
  }
  func.func @transform_0(%arg0: i32) -> (i32, i32) {
    %c0_i32 = arith.constant 0 : i32
    %c0_i32_0 = arith.constant 0 : i32
    %c0_i32_1 = arith.constant 0 : i32
    return %c0_i32, %c0_i32_0 : i32, i32
  }
  func.func @transform_1(%arg0: i32) -> (i32, i32) {
    %c0_i32 = arith.constant 0 : i32
    %c0_i32_0 = arith.constant 0 : i32
    %c0_i32_1 = arith.constant 0 : i32
    return %c0_i32, %c0_i32_0 : i32, i32
  }
  func.func @transform_2(%arg0: i32) -> (i32, i32) {
    %c0_i32 = arith.constant 0 : i32
    %c0_i32_0 = arith.constant 0 : i32
    return %arg0, %c0_i32 : i32, i32
  }
  func.func @transform_3(%arg0: i32) -> (i32, i32) {
    %c0_i32 = arith.constant 0 : i32
    %c0_i32_0 = arith.constant 0 : i32
    return %arg0, %c0_i32 : i32, i32
  }
}

</mosaic_0001>

<llo_original>
// kernel: tpu_custom_call.1
$region0: #{tpu_custom_call.1}
  #allocation0 [shape = 'u32[]', space=smem, size = 0x4, offset = 0x4, fixed_abs, tag = 'smem constant byte address 0x4 - core index']
  #allocation1 [shape = 'u32[144,128]{1,0:T(1,128)}', space=vmem, size = 0x12000, scoped, tag = 'internal scratch']
  #allocation2 [shape = 'f32[1,1]{1,0:T(1,128)S(6)}', space=smem, size = 0x200, scoped, tag = 'scoped memory for tpu_custom_call.1']
  #allocation3 [shape = 'f32[1,1]{1,0:T(1,128)S(6)}', space=smem, size = 0x200, scoped, tag = 'scoped memory for tpu_custom_call.1']
  %s0 = inlined_call_operand.<no memory space> [shape: f32[1,1], index: 0, kind: input, shape index: {}]
  %s1 = inlined_call_operand.<no memory space> [shape: f32[1,1], index: 1, kind: input, shape index: {}]
  %s2 = inlined_call_operand.hbm [shape: f32[8,1024], index: 2, kind: input, shape index: {}]
  %s3 = inlined_call_operand.hbm [shape: f32[8,1024], index: 3, kind: output, shape index: {}]
  %s4 = sld [smem:[#allocation0]]
  $region26: #{tpu_custom_call.1} parent=0
    _
  %s6 = ssub.s32 1, %s4
  %s7 = scalar_select 0, %s6, %s4
  %8 = sst [smem:[#allocation2]] %s0
  %9 = sst [smem:[#allocation3]] %s1
  $region1: #{tpu_custom_call.1} parent=0
    #allocation4 [shape = 'u8[32768]{0}', space=vmem, size = 0x8000, scoped, tag = 'input window, operand 2, single buffered']
    #allocation5 [shape = 's32[1]{0}', space=sflag, size = 0x4, scoped, tag = 'scoped memory for tpu_custom_call.1']
    #allocation6 [shape = 's32[1]{0}', space=sflag, size = 0x4, scoped, tag = 'scoped memory for tpu_custom_call.1']
    #allocation7 [shape = 'u8[32768]{0}', space=vmem, size = 0x8000, scoped, tag = 'output window, operand 0, single buffered']
    %10 = vsyncpa [#allocation5], 0
    %11 = vsyncpa [#allocation6], 0
    // Predicated region
    $region2: #{tpu_custom_call.1} parent=1 // pred_check
      _
    $region3: #{tpu_custom_call.1} parent=1 // pred_check_branch
      %13 = sbr.rel (0) target = $region5
    $region4: #{tpu_custom_call.1} parent=1 // pred_region
      _
    $region5: #{tpu_custom_call.1} parent=1 // pred_fallthru
      _
    // Predicated region
    $region6: #{tpu_custom_call.1} parent=1 // pred_check
      _
    $region7: #{tpu_custom_call.1} parent=1 // pred_check_branch
      %15 = sbr.rel (0) target = $region9
    $region8: #{tpu_custom_call.1} parent=1 // pred_region
      _
    $region9: #{tpu_custom_call.1} parent=1 // pred_fallthru
      _
    // Predicated region
    $region10: #{tpu_custom_call.1} parent=1 // pred_check
      _
    $region11: #{tpu_custom_call.1} parent=1 // pred_check_branch
      %17 = sbr.rel (0) target = $region13
    $region12: #{tpu_custom_call.1} parent=1 // pred_region
      %s19 = ssub.s32 1024, 1024
      %20 = vsyncadd [#allocation5], %s19
      %s22 = sshll.u32 [#allocation4], 4
      %s23 = int_to_ptr.vmem [resolvable:$true] %s22
      %25 = dma.hbm_to_vmem [thread:$0]  %s2, 1024, %s23, [#allocation5]
    $region13: #{tpu_custom_call.1} parent=1 // pred_fallthru
      _
    // Predicated region
    $region14: #{tpu_custom_call.1} parent=1 // pred_check
      _
    $region15: #{tpu_custom_call.1} parent=1 // pred_check_branch
      %27 = sbr.rel (0) target = $region17
    $region16: #{tpu_custom_call.1} parent=1 // pred_region
      %28 = dma.done [#allocation5], 1024
    $region17: #{tpu_custom_call.1} parent=1 // pred_fallthru
      _
    %s29 = sld [smem:[#allocation2]]
    %s30 = sld [smem:[#allocation3]]
    %v31 = vld [vmem:[#allocation4] sm:$0xff]
    %v32 = vld [vmem:[#allocation4 + $0x8] sm:$0xff]
    %v33 = vld [vmem:[#allocation4 + $0x10] sm:$0xff]
    %v34 = vld [vmem:[#allocation4 + $0x18] sm:$0xff]
    %v35 = vld [vmem:[#allocation4 + $0x20] sm:$0xff]
    %v36 = vld [vmem:[#allocation4 + $0x28] sm:$0xff]
    %v37 = vld [vmem:[#allocation4 + $0x30] sm:$0xff]
    %v38 = vld [vmem:[#allocation4 + $0x38] sm:$0xff]
    %v39 = vstv %s29
    %v40 = vmul.f32 %v39, %v31
    %v41 = vmul.f32 %v39, %v32
    %v42 = vmul.f32 %v39, %v33
    %v43 = vmul.f32 %v39, %v34
    %v44 = vmul.f32 %v39, %v35
    %v45 = vmul.f32 %v39, %v36
    %v46 = vmul.f32 %v39, %v37
    %v47 = vmul.f32 %v39, %v38
    %v48 = vstv %s30
    %v49 = vadd.f32 %v40, %v48
    %v50 = vadd.f32 %v41, %v48
    %v51 = vadd.f32 %v42, %v48
    %v52 = vadd.f32 %v43, %v48
    %v53 = vadd.f32 %v44, %v48
    %v54 = vadd.f32 %v45, %v48
    %v55 = vadd.f32 %v46, %v48
    %v56 = vadd.f32 %v47, %v48
    %57 = vst [vmem:[#allocation7] sm:$0xff] %v49
    %58 = vst [vmem:[#allocation7 + $0x8] sm:$0xff] %v50
    %59 = vst [vmem:[#allocation7 + $0x10] sm:$0xff] %v51
    %60 = vst [vmem:[#allocation7 + $0x18] sm:$0xff] %v52
    %61 = vst [vmem:[#allocation7 + $0x20] sm:$0xff] %v53
    %62 = vst [vmem:[#allocation7 + $0x28] sm:$0xff] %v54
    %63 = vst [vmem:[#allocation7 + $0x30] sm:$0xff] %v55
    %64 = vst [vmem:[#allocation7 + $0x38] sm:$0xff] %v56
    // Predicated region
    $region18: #{tpu_custom_call.1} parent=1 // pred_check
      _
    $region19: #{tpu_custom_call.1} parent=1 // pred_check_branch
      %66 = sbr.rel (0) target = $region21
    $region20: #{tpu_custom_call.1} parent=1 // pred_region
      %s68 = ssub.s32 1024, 1024
      %69 = vsyncadd [#allocation6], %s68
      %s71 = sshll.u32 [#allocation7], 4
      %s72 = int_to_ptr.vmem [resolvable:$true] %s71
      %74 = dma.vmem_to_hbm [thread:$0]  %s72, 1024, %s3, [#allocation6]
    $region21: #{tpu_custom_call.1} parent=1 // pred_fallthru
      _
    // Predicated region
    $region22: #{tpu_custom_call.1} parent=1 // pred_check
      _
    $region23: #{tpu_custom_call.1} parent=1 // pred_check_branch
      %76 = sbr.rel (0) target = $region25
    $region24: #{tpu_custom_call.1} parent=1 // pred_region
      %77 = dma.done [#allocation6], 1024
    $region25: #{tpu_custom_call.1} parent=1 // pred_fallthru
      _
    %78 = vsyncpa [#allocation5], 1
    %79 = vsyncpa [#allocation6], 1

</llo_original>
